<compile_context>
chip_gen: v7x
topology: tpu7x:2x2x1
jax: 0.10.0
libtpu: 0.0.40
codegen_flags: <defaults>
</compile_context>

<pallas_src>
import math
import jax
import jax.numpy as jnp
from jax.experimental import pallas as pl
from jax.experimental.pallas import tpu as pltpu


def _make_kernel(C, WV, block_rows):
    groups = block_rows // C  # batch elements per block

    def kernel(x_ref, a_ref, o_ref):
        # x_ref: (block_rows, WV)  rows = merged (n, c), c fastest; matmul dtype
        # a_ref: (WV, WV)          kron(I_W, adj.T); matmul dtype; VMEM-resident
        # o_ref: (block_rows, WV)  f32, lane-dense
        a = a_ref[...]
        x = x_ref[...]

        # gc1: rows @ kron(I_W, adj.T) == einsum('ncwl,vl->ncwv'); f32 accum.
        h = jnp.dot(x, a, preferred_element_type=jnp.float32)
        h = jnp.maximum(h, 0.0)  # ReLU in f32 (VPU fast path on all gens)

        # TODO(synk): training-mode dropout (Bernoulli mask + 1/(1-p) scale)
        # between gc1 and gc2 is omitted; this implements the inference path.

        # gc2: same contraction again (re-cast intermediate to matmul dtype).
        y = jnp.dot(h.astype(a.dtype), a, preferred_element_type=jnp.float32)

        # log_softmax over the channel axis: rows are ordered (n, c) with c
        # fastest, so each group of C consecutive rows is one batch element.
        # Sublane-only reshape (lanes untouched), max-stabilised, f32 math.
        y3 = y.reshape(groups, C, WV)
        m = jnp.max(y3, axis=1, keepdims=True)
        z = y3 - m
        lse = jnp.log(jnp.sum(jnp.exp(z), axis=1, keepdims=True))
        o_ref[...] = (z - lse).reshape(block_rows, WV).astype(o_ref.dtype)

    return kernel


def _pick_block_rows(rows, C, target=1024):
    """Largest divisor of `rows` that is a multiple of C and <= target.

    Prefers multiples of 8 (full f32 sublanes). `target`≈1024 sits in the
    recommended 512-2048 range for v7x (64 MiB VMEM); on v6e/v5e (128 MiB)
    2048-4096 would also be fine — per-block working set stays small either way.
    """
    best, best_aligned = C, None
    b = C
    limit = min(rows, target)
    while b <= limit:
        if rows % b == 0:
            best = b
            if b % 8 == 0:
                best_aligned = b
        b += C
    return best_aligned if best_aligned is not None else best


def adaptive_gcn_forward(x, adj, *, matmul_dtype=jnp.bfloat16):
    """x: (N, C, W, V) f32, adj: (V, V) f32 -> (N, C, W, V) f32."""
    N, C, W, V = x.shape
    assert adj.shape == (V, V), "adj must be square and match x's last dim"
    WV = W * V
    rows = N * C
    # NOTE: lane-dense unmasked stores assume WV % 128 == 0 (true at demo
    # shapes); other WV remain correct (block dim == full extent) but fall
    # back to masked stores.

    # Wrapper-side layout plumbing: free row-major reshape + one tiny kron.
    x2 = x.reshape(rows, WV).astype(matmul_dtype)
    a_blk = jnp.kron(jnp.eye(W, dtype=jnp.float32),
                     adj.T.astype(jnp.float32)).astype(matmul_dtype)

    block_rows = _pick_block_rows(rows, C)
    grid = (rows // block_rows,)

    # Advisory cost hint for the XLA scheduler (flops as performed, including
    # the structural zeros of the block-diagonal operand).
    itemsize = jnp.dtype(matmul_dtype).itemsize
    cost = pl.CostEstimate(
        flops=2 * 2 * rows * WV * WV,
        transcendentals=rows * WV + (rows // C) * WV,     # exp + log
        bytes_accessed=rows * WV * (itemsize + 4) + WV * WV * itemsize,
    )

    out_flat = pl.pallas_call(
        _make_kernel(C, WV, block_rows),
        out_shape=jax.ShapeDtypeStruct((rows, WV), jnp.float32),
        grid=grid,
        in_specs=[
            # x: streamed row blocks (default double-buffered).
            pl.BlockSpec((block_rows, WV), lambda i: (i, 0)),
            # A_blk: constant block index -> fetched once, VMEM-resident.
            pl.BlockSpec((WV, WV), lambda i: (0, 0)),
        ],
        out_specs=pl.BlockSpec((block_rows, WV), lambda i: (i, 0)),
        compiler_params=pltpu.CompilerParams(
            # Independent row blocks -> shard across TensorCores (v7x megacore).
            dimension_semantics=("parallel",),
            # Above the v5e scoped default, well under v7x's 64 MiB physical;
            # per-block working set at these block sizes is only a few MiB.
            vmem_limit_bytes=32 * 1024 * 1024,
        ),
        cost_estimate=cost,
    )(x2, a_blk)

    return out_flat.reshape(N, C, W, V)


def _reference(x, adj):
    """Pure-JAX mirror of the PyTorch f32 forward."""
    y1 = jnp.maximum(jnp.einsum("ncwl,vl->ncwv", x, adj), 0.0)
    y2 = jnp.einsum("ncwl,vl->ncwv", y1, adj)
    return jax.nn.log_softmax(y2, axis=1)


def _reference_bf16_path(x, adj):
    """Mirror of the kernel's bf16 block-diagonal contraction (fast-path check)."""
    N, C, W, V = x.shape
    a = jnp.kron(jnp.eye(W, dtype=jnp.float32),
                 adj.T.astype(jnp.float32)).astype(jnp.bfloat16)
    x2 = x.reshape(N * C, W * V).astype(jnp.bfloat16)
    h = jnp.maximum(jnp.dot(x2, a, preferred_element_type=jnp.float32), 0.0)
    y = jnp.dot(h.astype(jnp.bfloat16), a, preferred_element_type=jnp.float32)
    return jax.nn.log_softmax(y.reshape(N, C, W, V), axis=1)


if __name__ == "__main__":
    key = jax.random.PRNGKey(0)
    k_x, k_adj, k_w1, k_b1, k_w2, k_b2 = jax.random.split(key, 6)

    # Small shapes: batch N=2, channels C=4, width W=8, nodes V=16 (W*V = 128).
    N, C, W, V = 2, 4, 8, 16
    nfeat, nhid, nclass, dropout_p = V, 32, V, 0.5

    x = jax.random.normal(k_x, (N, C, W, V), dtype=jnp.float32)
    adj = jax.random.normal(k_adj, (V, V), dtype=jnp.float32)

    # GraphConvolution parameters (mirroring reset_parameters); they are never
    # used by the forward pass, exactly as in the PyTorch module.
    stdv1 = 1.0 / math.sqrt(nhid)
    gc1_w = jax.random.uniform(k_w1, (nfeat, nhid), jnp.float32, -stdv1, stdv1)
    gc1_b = jax.random.uniform(k_b1, (nhid,), jnp.float32, -stdv1, stdv1)
    stdv2 = 1.0 / math.sqrt(nclass)
    gc2_w = jax.random.uniform(k_w2, (nhid, nclass), jnp.float32, -stdv2, stdv2)
    gc2_b = jax.random.uniform(k_b2, (nclass,), jnp.float32, -stdv2, stdv2)
    del gc1_w, gc1_b, gc2_w, gc2_b  # unused in forward

    # (1) f32 matmul path: matches the PyTorch f32 forward (up to the MXU's
    #     default f32 precision, shared with the jnp reference).
    out_f32 = jax.block_until_ready(
        adaptive_gcn_forward(x, adj, matmul_dtype=jnp.float32))
    ref_f32 = _reference(x, adj)
    assert out_f32.shape == (N, C, W, V)
    assert jnp.allclose(out_f32, ref_f32, atol=1e-4, rtol=1e-4), "f32 mismatch"

    # (2) bf16 fast path (performance default; halves the HBM-bound x stream on
    #     v6e/v7x), validated against a reference mirroring the same bf16
    #     contraction.  Documented tolerance: bf16 matmul inputs, f32 accum.
    out_bf16 = jax.block_until_ready(adaptive_gcn_forward(x, adj))
    ref_bf16 = _reference_bf16_path(x, adj)
    assert out_bf16.shape == (N, C, W, V)
    assert jnp.allclose(out_bf16, ref_bf16, atol=5e-3, rtol=5e-3), "bf16 mismatch"

    print("KERNEL_OK")
</pallas_src>

<mosaic_0001>
module attributes {stable_mosaic.version = 11 : i64} {
  func.func @kernel(%arg0: i32, %arg1: memref<8x128xf32, #tpu.memory_space<vmem>>, %arg2: memref<128x128xf32, #tpu.memory_space<vmem>>, %arg3: memref<8x128xf32, #tpu.memory_space<vmem>>) attributes {dimension_semantics = [#tpu.dimension_semantics<parallel>], iteration_bounds = array<i64: 1>, scalar_prefetch = 0 : i64, scratch_operands = 0 : i64, tpu.core_type = #tpu.core_type<tc>, window_params = [{transform_indices = @transform_0, window_bounds = array<i64: 8, 128>}, {pipeline_mode = #tpu.pipeline_mode<synchronous>, transform_indices = @transform_1, window_bounds = array<i64: 128, 128>}, {transform_indices = @transform_2, window_bounds = array<i64: 8, 128>}]} {
    %c0 = arith.constant 0 : index
    %c0_0 = arith.constant 0 : index
    %0 = vector.load %arg2[%c0, %c0_0] : memref<128x128xf32, #tpu.memory_space<vmem>>, vector<128x128xf32>
    %c0_1 = arith.constant 0 : index
    %c0_2 = arith.constant 0 : index
    %1 = vector.load %arg1[%c0_1, %c0_2] : memref<8x128xf32, #tpu.memory_space<vmem>>, vector<8x128xf32>
    %cst = arith.constant dense<0.000000e+00> : vector<8x128xf32>
    %2 = tpu.matmul %1, %0, %cst {dimension_numbers = #tpu.dot_dimension_numbers<[1], [0], [0], [1], [0, 0, 1, 1], [], []>} : vector<8x128xf32>, vector<128x128xf32>, vector<8x128xf32> -> vector<8x128xf32>
    %cst_3 = arith.constant 0.000000e+00 : f32
    %3 = vector.broadcast %cst_3 : f32 to vector<8x128xf32>
    %4 = arith.maximumf %2, %3 : vector<8x128xf32>
    %cst_4 = arith.constant dense<0.000000e+00> : vector<8x128xf32>
    %5 = tpu.matmul %4, %0, %cst_4 {dimension_numbers = #tpu.dot_dimension_numbers<[1], [0], [0], [1], [0, 0, 1, 1], [], []>} : vector<8x128xf32>, vector<128x128xf32>, vector<8x128xf32> -> vector<8x128xf32>
    %6 = vector.shape_cast %5 : vector<8x128xf32> to vector<2x4x128xf32>
    %cst_5 = arith.constant dense<0xFF800000> : vector<2x128xf32>
    %7 = vector.multi_reduction <maximumf>, %6, %cst_5 [1] : vector<2x4x128xf32> to vector<2x128xf32>
    %8 = vector.shape_cast %7 : vector<2x128xf32> to vector<2x1x128xf32>
    %9 = vector.broadcast %8 : vector<2x1x128xf32> to vector<2x4x128xf32>
    %10 = arith.subf %6, %9 : vector<2x4x128xf32>
    %11 = math.exp %10 : vector<2x4x128xf32>
    %cst_6 = arith.constant dense<0.000000e+00> : vector<2x128xf32>
    %12 = vector.multi_reduction <add>, %11, %cst_6 [1] : vector<2x4x128xf32> to vector<2x128xf32>
    %13 = vector.shape_cast %12 : vector<2x128xf32> to vector<2x1x128xf32>
    %14 = math.log %13 : vector<2x1x128xf32>
    %15 = vector.broadcast %14 : vector<2x1x128xf32> to vector<2x4x128xf32>
    %16 = arith.subf %10, %15 : vector<2x4x128xf32>
    %17 = vector.shape_cast %16 : vector<2x4x128xf32> to vector<8x128xf32>
    %c0_7 = arith.constant 0 : index
    %c0_8 = arith.constant 0 : index
    %18 = vector.load %arg3[%c0_7, %c0_8] : memref<8x128xf32, #tpu.memory_space<vmem>>, vector<8x128xf32>
    tpu.vector_store %arg3[%c0_7, %c0_8], %17 {strides = array<i32>} : memref<8x128xf32, #tpu.memory_space<vmem>>, vector<8x128xf32>,
    return
  }
  func.func @transform_0(%arg0: i32) -> (i32, i32) {
    %c0_i32 = arith.constant 0 : i32
    %c0_i32_0 = arith.constant 0 : i32
    return %arg0, %c0_i32 : i32, i32
  }
  func.func @transform_1(%arg0: i32) -> (i32, i32) {
    %c0_i32 = arith.constant 0 : i32
    %c0_i32_0 = arith.constant 0 : i32
    %c0_i32_1 = arith.constant 0 : i32
    return %c0_i32, %c0_i32_0 : i32, i32
  }
  func.func @transform_2(%arg0: i32) -> (i32, i32) {
    %c0_i32 = arith.constant 0 : i32
    %c0_i32_0 = arith.constant 0 : i32
    return %arg0, %c0_i32 : i32, i32
  }
}

</mosaic_0001>

<llo_original>
// kernel: tpu_custom_call.1
$region0: #{tpu_custom_call.1}
  #allocation0 [shape = 'u32[]', space=smem, size = 0x4, offset = 0x4, fixed_abs, tag = 'smem constant byte address 0x4 - core index']
  #allocation1 [shape = 'u32[144,128]{1,0:T(1,128)}', space=vmem, size = 0x12000, scoped, tag = 'internal scratch']
  %s0 = inlined_call_operand.hbm [shape: f32[8,128], index: 0, kind: input, shape index: {}]
  %s1 = inlined_call_operand.hbm [shape: f32[128,128], index: 1, kind: input, shape index: {}]
  %s2 = inlined_call_operand.hbm [shape: f32[8,128], index: 2, kind: output, shape index: {}]
  %s3 = sld [smem:[#allocation0]]
  $region26: #{tpu_custom_call.1} parent=0
    _
  %s5 = ssub.s32 1, %s3
  %s6 = scalar_select 0, %s5, %s3
  $region1: #{tpu_custom_call.1} parent=0
    #allocation2 [shape = 'u8[4096]{0}', space=vmem, size = 0x1000, scoped, tag = 'input window, operand 0, single buffered']
    #allocation3 [shape = 's32[1]{0}', space=sflag, size = 0x4, scoped, tag = 'scoped memory for tpu_custom_call.1']
    #allocation4 [shape = 's32[1]{0}', space=sflag, size = 0x4, scoped, tag = 'scoped memory for tpu_custom_call.1']
    #allocation5 [shape = 'u8[65536]{0}', space=vmem, size = 0x10000, scoped, tag = 'input window, operand 1, single buffered']
    #allocation6 [shape = 's32[1]{0}', space=sflag, size = 0x4, scoped, tag = 'scoped memory for tpu_custom_call.1']
    #allocation7 [shape = 'u8[4096]{0}', space=vmem, size = 0x1000, scoped, tag = 'output window, operand 0, single buffered']
    %7 = vsyncpa [#allocation3], 0
    %8 = vsyncpa [#allocation6], 0
    %9 = vsyncpa [#allocation4], 0
    // Predicated region
    $region2: #{tpu_custom_call.1} parent=1 // pred_check
      _
    $region3: #{tpu_custom_call.1} parent=1 // pred_check_branch
      %11 = sbr.rel (0) target = $region5
    $region4: #{tpu_custom_call.1} parent=1 // pred_region
      %s13 = ssub.s32 128, 128
      %14 = vsyncadd [#allocation3], %s13
      %s16 = sshll.u32 [#allocation2], 4
      %s17 = int_to_ptr.vmem [resolvable:$true] %s16
      %19 = dma.hbm_to_vmem [thread:$0]  %s0, 128, %s17, [#allocation3]
    $region5: #{tpu_custom_call.1} parent=1 // pred_fallthru
      _
    // Predicated region
    $region6: #{tpu_custom_call.1} parent=1 // pred_check
      _
    $region7: #{tpu_custom_call.1} parent=1 // pred_check_branch
      %21 = sbr.rel (0) target = $region9
    $region8: #{tpu_custom_call.1} parent=1 // pred_region
      %s23 = ssub.s32 2048, 2048
      %24 = vsyncadd [#allocation6], %s23
      %s25 = sshll.u32 [#allocation5], 4
      %s26 = int_to_ptr.vmem [resolvable:$true] %s25
      %31 = dma.hbm_to_vmem [thread:$0]  %s1, 2048, %s26, [#allocation6], 128, 128, 8
    $region9: #{tpu_custom_call.1} parent=1 // pred_fallthru
      _
    // Predicated region
    $region10: #{tpu_custom_call.1} parent=1 // pred_check
      _
    $region11: #{tpu_custom_call.1} parent=1 // pred_check_branch
      %33 = sbr.rel (0) target = $region13
    $region12: #{tpu_custom_call.1} parent=1 // pred_region
      %34 = dma.done [#allocation3], 128
    $region13: #{tpu_custom_call.1} parent=1 // pred_fallthru
      _
    // Predicated region
    $region14: #{tpu_custom_call.1} parent=1 // pred_check
      _
    $region15: #{tpu_custom_call.1} parent=1 // pred_check_branch
      %36 = sbr.rel (0) target = $region17
    $region16: #{tpu_custom_call.1} parent=1 // pred_region
      %37 = dma.done [#allocation6], 2048
    $region17: #{tpu_custom_call.1} parent=1 // pred_fallthru
      _
    %v38 = vld [vmem:[#allocation5] sm:$0xff]
    %v39 = vld [vmem:[#allocation5 + $0x8] sm:$0xff]
    %v40 = vld [vmem:[#allocation5 + $0x10] sm:$0xff]
    %v41 = vld [vmem:[#allocation5 + $0x18] sm:$0xff]
    %v42 = vld [vmem:[#allocation5 + $0x20] sm:$0xff]
    %v43 = vld [vmem:[#allocation5 + $0x28] sm:$0xff]
    %v44 = vld [vmem:[#allocation5 + $0x30] sm:$0xff]
    %v45 = vld [vmem:[#allocation5 + $0x38] sm:$0xff]
    %v46 = vld [vmem:[#allocation5 + $0x40] sm:$0xff]
    %v47 = vld [vmem:[#allocation5 + $0x48] sm:$0xff]
    %v48 = vld [vmem:[#allocation5 + $0x50] sm:$0xff]
    %v49 = vld [vmem:[#allocation5 + $0x58] sm:$0xff]
    %v50 = vld [vmem:[#allocation5 + $0x60] sm:$0xff]
    %v51 = vld [vmem:[#allocation5 + $0x68] sm:$0xff]
    %v52 = vld [vmem:[#allocation5 + $0x70] sm:$0xff]
    %v53 = vld [vmem:[#allocation5 + $0x78] sm:$0xff]
    %v54 = vld [vmem:[#allocation2] sm:$0xff]
    %55 = vmatprep.subr.mxu0 0.0
    %56 = vmatpush1.msra.mxu0 %v38
    %57 = vmatprep.subr.mxu0 0.0
    %58 = vmatpush1.msra.mxu0 %v39
    %59 = vmatprep.subr.mxu0 0.0
    %60 = vmatpush1.msra.mxu0 %v40
    %61 = vmatprep.subr.mxu0 0.0
    %62 = vmatpush1.msra.mxu0 %v41
    %63 = vmatprep.subr.mxu0 0.0
    %64 = vmatpush1.msra.mxu0 %v42
    %65 = vmatprep.subr.mxu0 0.0
    %66 = vmatpush1.msra.mxu0 %v43
    %67 = vmatprep.subr.mxu0 0.0
    %68 = vmatpush1.msra.mxu0 %v44
    %69 = vmatprep.subr.mxu0 0.0
    %70 = vmatpush1.msra.mxu0 %v45
    %71 = vmatprep.subr.mxu0 0.0
    %72 = vmatpush1.msra.mxu0 %v46
    %73 = vmatprep.subr.mxu0 0.0
    %74 = vmatpush1.msra.mxu0 %v47
    %75 = vmatprep.subr.mxu0 0.0
    %76 = vmatpush1.msra.mxu0 %v48
    %77 = vmatprep.subr.mxu0 0.0
    %78 = vmatpush1.msra.mxu0 %v49
    %79 = vmatprep.subr.mxu0 0.0
    %80 = vmatpush1.msra.mxu0 %v50
    %81 = vmatprep.subr.mxu0 0.0
    %82 = vmatpush1.msra.mxu0 %v51
    %83 = vmatprep.subr.mxu0 0.0
    %84 = vmatpush1.msra.mxu0 %v52
    %85 = vmatprep.subr.mxu0 0.0
    %86 = vmatpush1.msra.mxu0 %v53
    %87 = vmatprep.subr.mxu0 0.0
    %88 = vmatpush1.msra.mxu0 0.0
    %89 = vmatprep.subr.mxu0 0.0
    %90 = vmatpush1.msra.mxu0 0.0
    %91 = vmatprep.subr.mxu0 0.0
    %92 = vmatpush1.msra.mxu0 0.0
    %93 = vmatprep.subr.mxu0 0.0
    %94 = vmatpush1.msra.mxu0 0.0
    %95 = vmatprep.subr.mxu0 0.0
    %96 = vmatpush1.msra.mxu0 0.0
    %97 = vmatprep.subr.mxu0 0.0
    %98 = vmatpush1.msra.mxu0 0.0
    %99 = vmatprep.subr.mxu0 0.0
    %100 = vmatpush1.msra.mxu0 0.0
    %101 = vmatprep.subr.mxu0 0.0
    %102 = vmatpush1.msra.mxu0 0.0
    %103 = vmatprep.subr.mxu0 0.0
    %104 = vmatpush1.msra.mxu0 0.0
    %105 = vmatprep.subr.mxu0 0.0
    %106 = vmatpush1.msra.mxu0 0.0
    %107 = vmatprep.subr.mxu0 0.0
    %108 = vmatpush1.msra.mxu0 0.0
    %109 = vmatprep.subr.mxu0 0.0
    %110 = vmatpush1.msra.mxu0 0.0
    %111 = vmatprep.subr.mxu0 0.0
    %112 = vmatpush1.msra.mxu0 0.0
    %113 = vmatprep.subr.mxu0 0.0
    %114 = vmatpush1.msra.mxu0 0.0
    %115 = vmatprep.subr.mxu0 0.0
    %116 = vmatpush1.msra.mxu0 0.0
    %117 = vmatprep.subr.mxu0 0.0
    %118 = vmatpush1.msra.mxu0 0.0
    %119 = vmatprep.mubr.f32.mxu0 0.0
    %120 = vmatmul.mubr.f32.gmra.mrb[0].mxu0 %v54
    %v121 = vpop.f32.mrb[0].mxu0
    %v122 = vadd.f32 0.0, %v121
    %v123 = vpop.f32.mrb[0].mxu0
    %124 = vdwg.mxu0
    %v125 = vmax.f32 %v122, 0.0
    %126 = vmatprep.subr.mxu0 0.0
    %127 = vmatpush1.msra.mxu0 %v38
    %128 = vmatprep.subr.mxu0 0.0
    %129 = vmatpush1.msra.mxu0 %v39
    %130 = vmatprep.subr.mxu0 0.0
    %131 = vmatpush1.msra.mxu0 %v40
    %132 = vmatprep.subr.mxu0 0.0
    %133 = vmatpush1.msra.mxu0 %v41
    %134 = vmatprep.subr.mxu0 0.0
    %135 = vmatpush1.msra.mxu0 %v42
    %136 = vmatprep.subr.mxu0 0.0
    %137 = vmatpush1.msra.mxu0 %v43
    %138 = vmatprep.subr.mxu0 0.0
    %139 = vmatpush1.msra.mxu0 %v44
    %140 = vmatprep.subr.mxu0 0.0
    %141 = vmatpush1.msra.mxu0 %v45
    %142 = vmatprep.subr.mxu0 0.0
    %143 = vmatpush1.msra.mxu0 %v46
    %144 = vmatprep.subr.mxu0 0.0
    %145 = vmatpush1.msra.mxu0 %v47
    %146 = vmatprep.subr.mxu0 0.0
    %147 = vmatpush1.msra.mxu0 %v48
    %148 = vmatprep.subr.mxu0 0.0
    %149 = vmatpush1.msra.mxu0 %v49
    %150 = vmatprep.subr.mxu0 0.0
    %151 = vmatpush1.msra.mxu0 %v50
    %152 = vmatprep.subr.mxu0 0.0
    %153 = vmatpush1.msra.mxu0 %v51
    %154 = vmatprep.subr.mxu0 0.0
    %155 = vmatpush1.msra.mxu0 %v52
    %156 = vmatprep.subr.mxu0 0.0
    %157 = vmatpush1.msra.mxu0 %v53
    %158 = vmatprep.subr.mxu0 0.0
    %159 = vmatpush1.msra.mxu0 0.0
    %160 = vmatprep.subr.mxu0 0.0
    %161 = vmatpush1.msra.mxu0 0.0
    %162 = vmatprep.subr.mxu0 0.0
    %163 = vmatpush1.msra.mxu0 0.0
    %164 = vmatprep.subr.mxu0 0.0
    %165 = vmatpush1.msra.mxu0 0.0
    %166 = vmatprep.subr.mxu0 0.0
    %167 = vmatpush1.msra.mxu0 0.0
    %168 = vmatprep.subr.mxu0 0.0
    %169 = vmatpush1.msra.mxu0 0.0
    %170 = vmatprep.subr.mxu0 0.0
    %171 = vmatpush1.msra.mxu0 0.0
    %172 = vmatprep.subr.mxu0 0.0
    %173 = vmatpush1.msra.mxu0 0.0
    %174 = vmatprep.subr.mxu0 0.0
    %175 = vmatpush1.msra.mxu0 0.0
    %176 = vmatprep.subr.mxu0 0.0
    %177 = vmatpush1.msra.mxu0 0.0
    %178 = vmatprep.subr.mxu0 0.0
    %179 = vmatpush1.msra.mxu0 0.0
    %180 = vmatprep.subr.mxu0 0.0
    %181 = vmatpush1.msra.mxu0 0.0
    %182 = vmatprep.subr.mxu0 0.0
    %183 = vmatpush1.msra.mxu0 0.0
    %184 = vmatprep.subr.mxu0 0.0
    %185 = vmatpush1.msra.mxu0 0.0
    %186 = vmatprep.subr.mxu0 0.0
    %187 = vmatpush1.msra.mxu0 0.0
    %188 = vmatprep.subr.mxu0 0.0
    %189 = vmatpush1.msra.mxu0 0.0
    %190 = vmatprep.mubr.f32.mxu0 0.0
    %191 = vmatmul.mubr.f32.gmra.mrb[0].mxu0 %v125
    %v192 = vpop.f32.mrb[0].mxu0
    %v193 = vadd.f32 0.0, %v192
    %v194 = vpop.f32.mrb[0].mxu0
    %195 = vdwg.mxu0
    %v197 = vcombine.high %v193, %v193
    %vm199 = vcmask 1043456
    %v200 = vsel %vm199, %v193, -inf
    %v201 = vrot.slane %v200, 4
    %v202 = vmax.f32 %v200, %v201
    %v203 = vrot.slane %v202, 2
    %v204 = vmax.f32 %v202, %v203
    %v205 = vrot.slane %v204, 1
    %v206 = vmax.f32 %v204, %v205
    %v207 = vsel %vm199, %v197, -inf
    %v208 = vrot.slane %v207, 4
    %v209 = vmax.f32 %v207, %v208
    %v210 = vrot.slane %v209, 2
    %v211 = vmax.f32 %v209, %v210
    %v212 = vrot.slane %v211, 1
    %v213 = vmax.f32 %v211, %v212
    %v214 = vsub.f32 %v193, %v206
    %v215 = vsub.f32 %v197, %v213
    %v216 = vmul.f32 %v214, 1.442695
    %v217 = vpow.pop %v216
    %v218 = vmul.f32 %v215, 1.442695
    %v219 = vpow.pop %v218
    %v220 = vsel %vm199, %v217, 0.0
    %v221 = vrot.slane %v220, 4
    %v222 = vadd.f32 %v220, %v221
    %v223 = vrot.slane %v222, 2
    %v224 = vadd.f32 %v222, %v223
    %v225 = vrot.slane %v224, 1
    %v226 = vadd.f32 %v224, %v225
    %v227 = vsel %vm199, %v219, 0.0
    %v228 = vrot.slane %v227, 4
    %v229 = vadd.f32 %v227, %v228
    %v230 = vrot.slane %v229, 2
    %v231 = vadd.f32 %v229, %v230
    %v232 = vrot.slane %v231, 1
    %v233 = vadd.f32 %v231, %v232
    %v234 = vlog2.pop %v226
    %v235 = vmul.f32 %v234, 0.6931472
    %v236 = vlog2.pop %v233
    %v237 = vmul.f32 %v236, 0.6931472
    %v238 = vsub.f32 %v214, %v235
    %v239 = vsub.f32 %v215, %v237
    %v242 = vcombine.low %v238, %v239
    %244 = vst [vmem:[#allocation7] sm:$0xff] %v242
    // Predicated region
    $region18: #{tpu_custom_call.1} parent=1 // pred_check
      _
    $region19: #{tpu_custom_call.1} parent=1 // pred_check_branch
      %246 = sbr.rel (0) target = $region21
    $region20: #{tpu_custom_call.1} parent=1 // pred_region
      %s248 = ssub.s32 128, 128
      %249 = vsyncadd [#allocation4], %s248
      %s251 = sshll.u32 [#allocation7], 4
      %s252 = int_to_ptr.vmem [resolvable:$true] %s251
      %254 = dma.vmem_to_hbm [thread:$0]  %s252, 128, %s2, [#allocation4]
    $region21: #{tpu_custom_call.1} parent=1 // pred_fallthru
      _
    // Predicated region
    $region22: #{tpu_custom_call.1} parent=1 // pred_check
      _
    $region23: #{tpu_custom_call.1} parent=1 // pred_check_branch
      %256 = sbr.rel (0) target = $region25
    $region24: #{tpu_custom_call.1} parent=1 // pred_region
      %257 = dma.done [#allocation4], 128
    $region25: #{tpu_custom_call.1} parent=1 // pred_fallthru
      _
    %258 = vsyncpa [#allocation3], 1
    %259 = vsyncpa [#allocation6], 1
    %260 = vsyncpa [#allocation4], 1

</llo_original>
